<compile_context>
chip_gen: v6e
topology: v6e:2x2x1
jax: 0.10.0
libtpu: 0.0.40
codegen_flags: <defaults>
</compile_context>

<pallas_src>
import jax
import jax.numpy as jnp
import numpy as np
from jax.experimental import pallas as pl
from jax.experimental.pallas import tpu as pltpu


def _round_up(x, m):
    return ((x + m - 1) // m) * m


def attention_kernel(x_ref, m_ref, wT_ref, bw_ref, v_ref, bv_ref, z_ref, a_ref):
    bb, T, H = x_ref.shape

    # h = tanh(inputs @ W^T + b_W): one MXU matmul over the flattened slab.
    # T is padded to a multiple of 8 host-side, so these reshapes stay
    # sublane-tile aligned and copy-free.
    x2 = x_ref[...].reshape(bb * T, H)
    h = jnp.tanh(
        jnp.dot(x2.astype(wT_ref.dtype), wT_ref[...],
                preferred_element_type=jnp.float32)
        + bw_ref[...])                                        # (bb*T, H) f32

    # Score path in (bb, T, 1) keepdims layout (T on sublanes), matching x / z
    # so the final re-weighting is a pure lane-broadcast multiply.
    s = (jnp.sum(h.reshape(bb, T, H) * v_ref[...], axis=-1, keepdims=True)
         + bv_ref[0])                                         # (bb, T, 1)

    # u = mask * exp(s)   (no max-subtraction, matching the module exactly).
    u = jnp.exp(s) * m_ref[...][:, :, None]                   # (bb, T, 1)
    denom = jnp.sum(u, axis=1, keepdims=True)                 # (bb, 1, 1)
    a = u / denom                                             # (bb, T, 1)

    # Re-read x here instead of keeping it live across the whole chain.
    z_ref[...] = (x_ref[...] * a).astype(z_ref.dtype)
    a_ref[...] = a[..., 0].astype(a_ref.dtype)


def _pick_tiling(B, T_pad, H, w_itemsize, block_b):
    """Pick the batch tile size and VMEM limit from this chip's VMEM capacity."""
    try:
        vmem_cap = int(pltpu.get_tpu_info().vmem_capacity_bytes)
    except Exception:  # not on TPU / API unavailable: assume a 128 MiB part
        vmem_cap = 128 * 1024 * 1024

    # ~78% of physical: ~100 MiB on v5e/v6e (128 MiB), ~50 MiB on v7x (64 MiB).
    vmem_limit = int(vmem_cap * 0.78)
    tile_budget = vmem_limit - (4 << 20)          # headroom for compiler scratch

    Hp = _round_up(H, 128)
    Tl = _round_up(T_pad, 128)
    # Per batch row: x (double-buffered) + z (double-buffered) + h intermediate,
    # all f32, plus the tiny lane-padded mask / a rows (double-buffered).
    per_row = (2 + 2 + 1) * T_pad * Hp * 4 + 4 * Tl * 4
    # Grid-invariant inputs: W^T (double-buffered) + b_W / v tiles + slack.
    fixed = 2 * Hp * Hp * w_itemsize + 4 * 8 * Hp * 4 + (1 << 20)
    bb_cap = max(1, (tile_budget - fixed) // per_row)

    if block_b is not None:
        bb = max(1, int(block_b))
    elif B <= 8:
        bb = B                      # single block: block dims equal full array
    else:
        # Multiple blocks: bb must be a multiple of 8 (sublane constraint on
        # the (bb, T) mask / a blocks) and <= ~B/2 so the "parallel" batch
        # grid has at least 2 steps for the two v7x TensorCores.
        half = max(8, (B // 2) // 8 * 8)
        bb = max(8, (min(int(bb_cap), half) // 8) * 8)
    # TODO(synk): for very large T*H (where even 8 batch rows exceed VMEM) add
    # a T grid axis ("arbitrary", last) with a two-pass denom accumulator.

    Bp = _round_up(B, bb)
    needed = fixed + bb * per_row + (4 << 20)
    vmem_limit = int(min(vmem_cap - (2 << 20), max(vmem_limit, needed)))
    return bb, Bp, vmem_limit


def attention_forward(params, inputs, mask, *, block_b=None):
    """inputs: (B, T, H), mask: (B, T) -> (z: (B, T, H), a: (B, T))."""
    B, T, H = inputs.shape
    x = inputs.astype(jnp.float32)
    m = mask.astype(jnp.float32)

    # Pad T to a multiple of 8 (copy-free in-kernel reshapes).  Padded time
    # steps carry mask = 0 so they do not contribute to the softmax sum.
    Tp = _round_up(T, 8)
    if Tp != T:
        x = jnp.pad(x, ((0, 0), (0, Tp - T), (0, 0)))
        m = jnp.pad(m, ((0, 0), (0, Tp - T)))

    # Weights.  For large H the matmul is worth running in bf16 (f32 acc);
    # for small H the kernel is HBM-bound and f32 is exact and free.
    w_dtype = jnp.bfloat16 if H >= 512 else jnp.float32
    wT = jnp.transpose(params["W_w"]).astype(w_dtype)         # (H, H)
    bw = params["W_b"].reshape(1, H).astype(jnp.float32)      # (1, H)
    vr = params["v_w"].reshape(1, H).astype(jnp.float32)      # (1, H)
    bv = params["v_b"].reshape(1).astype(jnp.float32)         # (1,) -> SMEM

    bb, Bp, vmem_limit = _pick_tiling(B, Tp, H, jnp.dtype(w_dtype).itemsize,
                                      block_b)
    if Bp != B:
        # Padded batch rows get an all-ones mask so denom > 0 (no 0/0 NaNs);
        # their outputs are sliced off below.
        x = jnp.pad(x, ((0, Bp - B), (0, 0), (0, 0)))
        m = jnp.pad(m, ((0, Bp - B), (0, 0)), constant_values=1.0)

    z, a = pl.pallas_call(
        attention_kernel,
        out_shape=(jax.ShapeDtypeStruct((Bp, Tp, H), jnp.float32),
                   jax.ShapeDtypeStruct((Bp, Tp), jnp.float32)),
        grid_spec=pltpu.PrefetchScalarGridSpec(
            num_scalar_prefetch=0,
            grid=(Bp // bb,),
            in_specs=[
                pl.BlockSpec((bb, Tp, H), lambda b: (b, 0, 0)),    # inputs
                pl.BlockSpec((bb, Tp), lambda b: (b, 0)),          # mask
                pl.BlockSpec((H, H), lambda b: (0, 0)),            # W^T
                pl.BlockSpec((1, H), lambda b: (0, 0)),            # b_W
                pl.BlockSpec((1, H), lambda b: (0, 0)),            # v row
                pl.BlockSpec(memory_space=pltpu.MemorySpace.SMEM), # b_v scalar
            ],
            out_specs=[
                pl.BlockSpec((bb, Tp, H), lambda b: (b, 0, 0)),    # z
                pl.BlockSpec((bb, Tp), lambda b: (b, 0)),          # a
            ],
        ),
        compiler_params=pltpu.CompilerParams(
            dimension_semantics=("parallel",),
            vmem_limit_bytes=vmem_limit),
    )(x, m, wT, bw, vr, bv)

    return z[:B, :T], a[:B, :T]


def init_params(key, hidden_size):
    """Deterministic init matching nn.Linear(H, H) and nn.Linear(H, 1)."""
    k1, k2, k3, k4 = jax.random.split(key, 4)
    s = 1.0 / jnp.sqrt(jnp.float32(hidden_size))
    return {
        "W_w": jax.random.uniform(k1, (hidden_size, hidden_size), jnp.float32, -s, s),
        "W_b": jax.random.uniform(k2, (hidden_size,), jnp.float32, -s, s),
        "v_w": jax.random.uniform(k3, (1, hidden_size), jnp.float32, -s, s),
        "v_b": jax.random.uniform(k4, (1,), jnp.float32, -s, s),
    }


def attention_ref(params, inputs, mask):
    """Pure-JAX reference (mirrors the PyTorch forward exactly)."""
    hp = jax.lax.Precision.HIGHEST
    h = jnp.tanh(jnp.einsum("bth,kh->btk", inputs, params["W_w"], precision=hp)
                 + params["W_b"])
    u = jnp.exp(jnp.einsum("bth,h->bt", h, params["v_w"][0], precision=hp)
                + params["v_b"][0])
    u = mask.astype(jnp.float32) * u
    a = u / jnp.sum(u, axis=1, keepdims=True)
    z = inputs * a[:, :, None]
    return z, a


if __name__ == "__main__":
    batch, seq_len, hidden = 4, 16, 32

    key = jax.random.PRNGKey(0)
    key, kx, kp = jax.random.split(key, 3)

    inputs = jax.random.normal(kx, (batch, seq_len, hidden), jnp.float32)
    lengths = jnp.array([16, 9, 5, 12], dtype=jnp.int32)
    mask = (jnp.arange(seq_len)[None, :] < lengths[:, None]).astype(jnp.float32)

    params = init_params(kp, hidden)

    z, a = jax.jit(attention_forward)(params, inputs, mask)
    z = jax.block_until_ready(z)
    a = jax.block_until_ready(a)

    assert z.shape == (batch, seq_len, hidden)
    assert a.shape == (batch, seq_len)

    z_ref, a_ref = attention_ref(params, inputs, mask)
    np.testing.assert_allclose(np.asarray(z), np.asarray(z_ref), rtol=1e-3, atol=1e-3)
    np.testing.assert_allclose(np.asarray(a), np.asarray(a_ref), rtol=1e-3, atol=1e-3)

    # Second small case: exercises the multi-block batch path (B > 8, padded
    # batch rows with all-ones mask) and the T -> multiple-of-8 padding.
    batch2, seq2 = 12, 10
    key, kx2, kl2 = jax.random.split(key, 3)
    inputs2 = jax.random.normal(kx2, (batch2, seq2, hidden), jnp.float32)
    lengths2 = jax.random.randint(kl2, (batch2,), 1, seq2 + 1)
    mask2 = (jnp.arange(seq2)[None, :] < lengths2[:, None]).astype(jnp.float32)

    z2, a2 = jax.jit(attention_forward)(params, inputs2, mask2)
    z2 = jax.block_until_ready(z2)
    a2 = jax.block_until_ready(a2)

    z2_ref, a2_ref = attention_ref(params, inputs2, mask2)
    np.testing.assert_allclose(np.asarray(z2), np.asarray(z2_ref), rtol=1e-3, atol=1e-3)
    np.testing.assert_allclose(np.asarray(a2), np.asarray(a2_ref), rtol=1e-3, atol=1e-3)

    print("KERNEL_OK")
</pallas_src>

<mosaic_0001>
module attributes {stable_mosaic.version = 11 : i64} {
  func.func @attention_kernel(%arg0: i32, %arg1: memref<4x16x32xf32, #tpu.memory_space<vmem>>, %arg2: memref<4x16xf32, #tpu.memory_space<vmem>>, %arg3: memref<32x32xf32, #tpu.memory_space<vmem>>, %arg4: memref<1x32xf32, #tpu.memory_space<vmem>>, %arg5: memref<1x32xf32, #tpu.memory_space<vmem>>, %arg6: memref<1xf32, #tpu.memory_space<smem>>, %arg7: memref<4x16x32xf32, #tpu.memory_space<vmem>>, %arg8: memref<4x16xf32, #tpu.memory_space<vmem>>) attributes {dimension_semantics = [#tpu.dimension_semantics<parallel>], iteration_bounds = array<i64: 1>, scalar_prefetch = 0 : i64, scratch_operands = 0 : i64, tpu.core_type = #tpu.core_type<tc>, window_params = [{transform_indices = @transform_0, window_bounds = array<i64: 4, 16, 32>}, {transform_indices = @transform_1, window_bounds = array<i64: 4, 16>}, {pipeline_mode = #tpu.pipeline_mode<synchronous>, transform_indices = @transform_2, window_bounds = array<i64: 32, 32>}, {pipeline_mode = #tpu.pipeline_mode<synchronous>, transform_indices = @transform_3, window_bounds = array<i64: 1, 32>}, {pipeline_mode = #tpu.pipeline_mode<synchronous>, transform_indices = @transform_4, window_bounds = array<i64: 1, 32>}, {transform_indices = @transform_5, window_bounds = array<i64: 1>}, {transform_indices = @transform_6, window_bounds = array<i64: 4, 16, 32>}, {transform_indices = @transform_7, window_bounds = array<i64: 4, 16>}]} {
    %c0 = arith.constant 0 : index
    %c0_0 = arith.constant 0 : index
    %c0_1 = arith.constant 0 : index
    %0 = vector.load %arg1[%c0, %c0_0, %c0_1] : memref<4x16x32xf32, #tpu.memory_space<vmem>>, vector<4x16x32xf32>
    %1 = vector.shape_cast %0 : vector<4x16x32xf32> to vector<64x32xf32>
    %c0_2 = arith.constant 0 : index
    %c0_3 = arith.constant 0 : index
    %2 = vector.load %arg3[%c0_2, %c0_3] : memref<32x32xf32, #tpu.memory_space<vmem>>, vector<32x32xf32>
    %cst = arith.constant dense<0.000000e+00> : vector<64x32xf32>
    %3 = tpu.matmul %1, %2, %cst {dimension_numbers = #tpu.dot_dimension_numbers<[1], [0], [0], [1], [0, 0, 1, 1], [], []>} : vector<64x32xf32>, vector<32x32xf32>, vector<64x32xf32> -> vector<64x32xf32>
    %c0_4 = arith.constant 0 : index
    %c0_5 = arith.constant 0 : index
    %4 = vector.load %arg4[%c0_4, %c0_5] : memref<1x32xf32, #tpu.memory_space<vmem>>, vector<1x32xf32>
    %5 = vector.broadcast %4 : vector<1x32xf32> to vector<64x32xf32>
    %6 = arith.addf %3, %5 : vector<64x32xf32>
    %7 = math.tanh %6 : vector<64x32xf32>
    %8 = vector.shape_cast %7 : vector<64x32xf32> to vector<4x16x32xf32>
    %c0_6 = arith.constant 0 : index
    %c0_7 = arith.constant 0 : index
    %9 = vector.load %arg5[%c0_6, %c0_7] : memref<1x32xf32, #tpu.memory_space<vmem>>, vector<1x32xf32>
    %10 = vector.shape_cast %9 : vector<1x32xf32> to vector<1x1x32xf32>
    %11 = vector.broadcast %10 : vector<1x1x32xf32> to vector<4x16x32xf32>
    %12 = arith.mulf %8, %11 : vector<4x16x32xf32>
    %cst_8 = arith.constant dense<0.000000e+00> : vector<4x16xf32>
    %13 = vector.multi_reduction <add>, %12, %cst_8 [2] : vector<4x16x32xf32> to vector<4x16xf32>
    %14 = vector.shape_cast %13 : vector<4x16xf32> to vector<4x16x1xf32>
    %c0_9 = arith.constant 0 : index
    %15 = memref.load %arg6[%c0_9] : memref<1xf32, #tpu.memory_space<smem>>
    %16 = vector.broadcast %15 : f32 to vector<4x16x1xf32>
    %17 = arith.addf %14, %16 : vector<4x16x1xf32>
    %18 = math.exp %17 : vector<4x16x1xf32>
    %c0_10 = arith.constant 0 : index
    %c0_11 = arith.constant 0 : index
    %19 = vector.load %arg2[%c0_10, %c0_11] : memref<4x16xf32, #tpu.memory_space<vmem>>, vector<4x16xf32>
    %20 = vector.shape_cast %19 : vector<4x16xf32> to vector<4x16x1xf32>
    %21 = arith.mulf %18, %20 : vector<4x16x1xf32>
    %cst_12 = arith.constant dense<0.000000e+00> : vector<4x1xf32>
    %22 = vector.multi_reduction <add>, %21, %cst_12 [1] : vector<4x16x1xf32> to vector<4x1xf32>
    %23 = vector.shape_cast %22 : vector<4x1xf32> to vector<4x1x1xf32>
    %24 = vector.broadcast %23 : vector<4x1x1xf32> to vector<4x16x1xf32>
    %25 = arith.divf %21, %24 : vector<4x16x1xf32>
    %c0_13 = arith.constant 0 : index
    %c0_14 = arith.constant 0 : index
    %c0_15 = arith.constant 0 : index
    %26 = vector.load %arg1[%c0_13, %c0_14, %c0_15] : memref<4x16x32xf32, #tpu.memory_space<vmem>>, vector<4x16x32xf32>
    %27 = vector.broadcast %25 : vector<4x16x1xf32> to vector<4x16x32xf32>
    %28 = arith.mulf %26, %27 : vector<4x16x32xf32>
    %c0_16 = arith.constant 0 : index
    %c0_17 = arith.constant 0 : index
    %c0_18 = arith.constant 0 : index
    %29 = vector.load %arg7[%c0_16, %c0_17, %c0_18] : memref<4x16x32xf32, #tpu.memory_space<vmem>>, vector<4x16x32xf32>
    tpu.vector_store %arg7[%c0_16, %c0_17, %c0_18], %28 {strides = array<i32>} : memref<4x16x32xf32, #tpu.memory_space<vmem>>, vector<4x16x32xf32>,
    %30 = vector.shape_cast %25 : vector<4x16x1xf32> to vector<4x16xf32>
    %c0_19 = arith.constant 0 : index
    %c0_20 = arith.constant 0 : index
    %31 = vector.load %arg8[%c0_19, %c0_20] : memref<4x16xf32, #tpu.memory_space<vmem>>, vector<4x16xf32>
    tpu.vector_store %arg8[%c0_19, %c0_20], %30 {strides = array<i32>} : memref<4x16xf32, #tpu.memory_space<vmem>>, vector<4x16xf32>,
    return
  }
  func.func @transform_0(%arg0: i32) -> (i32, i32, i32) {
    %c0_i32 = arith.constant 0 : i32
    %c0_i32_0 = arith.constant 0 : i32
    %c0_i32_1 = arith.constant 0 : i32
    return %arg0, %c0_i32, %c0_i32_0 : i32, i32, i32
  }
  func.func @transform_1(%arg0: i32) -> (i32, i32) {
    %c0_i32 = arith.constant 0 : i32
    %c0_i32_0 = arith.constant 0 : i32
    return %arg0, %c0_i32 : i32, i32
  }
  func.func @transform_2(%arg0: i32) -> (i32, i32) {
    %c0_i32 = arith.constant 0 : i32
    %c0_i32_0 = arith.constant 0 : i32
    %c0_i32_1 = arith.constant 0 : i32
    return %c0_i32, %c0_i32_0 : i32, i32
  }
  func.func @transform_3(%arg0: i32) -> (i32, i32) {
    %c0_i32 = arith.constant 0 : i32
    %c0_i32_0 = arith.constant 0 : i32
    %c0_i32_1 = arith.constant 0 : i32
    return %c0_i32, %c0_i32_0 : i32, i32
  }
  func.func @transform_4(%arg0: i32) -> (i32, i32) {
    %c0_i32 = arith.constant 0 : i32
    %c0_i32_0 = arith.constant 0 : i32
    %c0_i32_1 = arith.constant 0 : i32
    return %c0_i32, %c0_i32_0 : i32, i32
  }
  func.func @transform_5(%arg0: i32) -> i32 {
    %c0_i32 = arith.constant 0 : i32
    %c0_i32_0 = arith.constant 0 : i32
    return %c0_i32 : i32
  }
  func.func @transform_6(%arg0: i32) -> (i32, i32, i32) {
    %c0_i32 = arith.constant 0 : i32
    %c0_i32_0 = arith.constant 0 : i32
    %c0_i32_1 = arith.constant 0 : i32
    return %arg0, %c0_i32, %c0_i32_0 : i32, i32, i32
  }
  func.func @transform_7(%arg0: i32) -> (i32, i32) {
    %c0_i32 = arith.constant 0 : i32
    %c0_i32_0 = arith.constant 0 : i32
    return %arg0, %c0_i32 : i32, i32
  }
}

</mosaic_0001>

<llo_original>
// kernel: attention_forward.1
$region0: #{attention_forward.1}
  #allocation0 [shape = 'u32[]', space=smem, size = 0x4, offset = 0x4, fixed_abs, tag = 'smem constant byte address 0x4 - core index']
  #allocation1 [shape = 'u32[144,128]{1,0:T(1,128)}', space=vmem, size = 0x12000, scoped, tag = 'internal scratch']
  #allocation2 [shape = 'f32[1]{0:T(128)S(6)}', space=smem, size = 0x200, scoped, tag = 'scoped memory for attention_forward.1']
  %s0 = inlined_call_operand.vmem [shape: f32[4,16,32], index: 0, kind: input, shape index: {}]
  %s1 = inlined_call_operand.vmem [shape: f32[4,16], index: 1, kind: input, shape index: {}]
  %s2 = inlined_call_operand.vmem [shape: f32[32,32], index: 2, kind: input, shape index: {}]
  %s3 = inlined_call_operand.vmem [shape: f32[1,32], index: 3, kind: input, shape index: {}]
  %s4 = inlined_call_operand.vmem [shape: f32[1,32], index: 4, kind: input, shape index: {}]
  %s5 = inlined_call_operand.<no memory space> [shape: f32[1], index: 5, kind: input, shape index: {}]
  %s6 = inlined_call_operand.hbm [shape: f32[4,16,32], index: 6, kind: output, shape index: {0}]
  %s7 = inlined_call_operand.hbm [shape: f32[4,16], index: 7, kind: output, shape index: {1}]
  %8 = xla_tuple %s6, %s7
  %s9 = sld [smem:[#allocation0]]
  $region42: #{attention_forward.1} parent=0
    _
  %s11 = ssub.s32 1, %s9
  %s12 = scalar_select 0, %s11, %s9
  %13 = sst [smem:[#allocation2]] %s5
  $region1: #{attention_forward.1} parent=0
    #allocation3 [shape = 'u8[32768]{0}', space=vmem, size = 0x8000, scoped, tag = 'output window, operand 0, single buffered']
    #allocation4 [shape = 's32[1]{0}', space=sflag, size = 0x4, scoped, tag = 'scoped memory for attention_forward.1']
    #allocation5 [shape = 'u8[2048]{0}', space=vmem, size = 0x800, scoped, tag = 'output window, operand 1, single buffered']
    #allocation6 [shape = 's32[1]{0}', space=sflag, size = 0x4, scoped, tag = 'scoped memory for attention_forward.1']
    %14 = vsyncpa [#allocation4], 0
    %15 = vsyncpa [#allocation6], 0
    // Predicated region
    $region2: #{attention_forward.1} parent=1 // pred_check
      _
    $region3: #{attention_forward.1} parent=1 // pred_check_branch
      %17 = sbr.rel (0) target = $region5
    $region4: #{attention_forward.1} parent=1 // pred_region
      _
    $region5: #{attention_forward.1} parent=1 // pred_fallthru
      _
    // Predicated region
    $region6: #{attention_forward.1} parent=1 // pred_check
      _
    $region7: #{attention_forward.1} parent=1 // pred_check_branch
      %19 = sbr.rel (0) target = $region9
    $region8: #{attention_forward.1} parent=1 // pred_region
      _
    $region9: #{attention_forward.1} parent=1 // pred_fallthru
      _
    // Predicated region
    $region10: #{attention_forward.1} parent=1 // pred_check
      _
    $region11: #{attention_forward.1} parent=1 // pred_check_branch
      %21 = sbr.rel (0) target = $region13
    $region12: #{attention_forward.1} parent=1 // pred_region
      _
    $region13: #{attention_forward.1} parent=1 // pred_fallthru
      _
    // Predicated region
    $region14: #{attention_forward.1} parent=1 // pred_check
      _
    $region15: #{attention_forward.1} parent=1 // pred_check_branch
      %23 = sbr.rel (0) target = $region17
    $region16: #{attention_forward.1} parent=1 // pred_region
      _
    $region17: #{attention_forward.1} parent=1 // pred_fallthru
      _
    // Predicated region
    $region18: #{attention_forward.1} parent=1 // pred_check
      _
    $region19: #{attention_forward.1} parent=1 // pred_check_branch
      %25 = sbr.rel (0) target = $region21
    $region20: #{attention_forward.1} parent=1 // pred_region
      _
    $region21: #{attention_forward.1} parent=1 // pred_fallthru
      _
    // Predicated region
    $region22: #{attention_forward.1} parent=1 // pred_check
      _
    $region23: #{attention_forward.1} parent=1 // pred_check_branch
      %27 = sbr.rel (0) target = $region25
    $region24: #{attention_forward.1} parent=1 // pred_region
      _
    $region25: #{attention_forward.1} parent=1 // pred_fallthru
      _
    %v28 = vld [vmem:[%s0] sm:$0xff]
    %v29 = vld [vmem:[%s0 + $0x8] sm:$0xff]
    %v30 = vld [vmem:[%s0 + $0x10] sm:$0xff]
    %v31 = vld [vmem:[%s0 + $0x18] sm:$0xff]
    %v32 = vld [vmem:[%s0 + $0x20] sm:$0xff]
    %v33 = vld [vmem:[%s0 + $0x28] sm:$0xff]
    %v34 = vld [vmem:[%s0 + $0x30] sm:$0xff]
    %v35 = vld [vmem:[%s0 + $0x38] sm:$0xff]
    %v36 = vld [vmem:[%s2] sm:$0xff]
    %v37 = vld [vmem:[%s2 + $0x8] sm:$0xff]
    %v38 = vld [vmem:[%s2 + $0x10] sm:$0xff]
    %v39 = vld [vmem:[%s2 + $0x18] sm:$0xff]
    %v40 = vld [vmem:[%s3] sm:$0x1]
    %v42 = vlaneseq
    %v43 = vshrl.u32 %v42, 7
    %v44 = vsub.s32 0, %v43
    %v45 = vrot.slane %v40, %v44
    %vm47 = vcmask 261120
    %v49 = vsel %vm47, %v28, 0
    %v52 = vsel %vm47, %v29, 0
    %v55 = vsel %vm47, %v30, 0
    %v58 = vsel %vm47, %v31, 0
    %v61 = vsel %vm47, %v32, 0
    %v64 = vsel %vm47, %v33, 0
    %v67 = vsel %vm47, %v34, 0
    %v70 = vsel %vm47, %v35, 0
    %72 = vmatprep.subr.mxu0 0.0
    %73 = vmatpush1.msra.mxu0 0.0
    %74 = vmatprep.subr.mxu0 0.0
    %75 = vmatpush1.msra.mxu0 0.0
    %76 = vmatprep.subr.mxu0 0.0
    %77 = vmatpush1.msra.mxu0 0.0
    %78 = vmatprep.subr.mxu0 0.0
    %79 = vmatpush1.msra.mxu0 0.0
    %80 = vmatprep.subr.mxu0 0.0
    %81 = vmatpush1.msra.mxu0 0.0
    %82 = vmatprep.subr.mxu0 0.0
    %83 = vmatpush1.msra.mxu0 0.0
    %84 = vmatprep.subr.mxu0 0.0
    %85 = vmatpush1.msra.mxu0 0.0
    %86 = vmatprep.subr.mxu0 0.0
    %87 = vmatpush1.msra.mxu0 0.0
    %88 = vmatprep.subr.mxu0 0.0
    %89 = vmatpush1.msra.mxu0 0.0
    %90 = vmatprep.subr.mxu0 0.0
    %91 = vmatpush1.msra.mxu0 0.0
    %92 = vmatprep.subr.mxu0 0.0
    %93 = vmatpush1.msra.mxu0 0.0
    %94 = vmatprep.subr.mxu0 0.0
    %95 = vmatpush1.msra.mxu0 0.0
    %96 = vmatprep.subr.mxu0 0.0
    %97 = vmatpush1.msra.mxu0 %v39
    %98 = vmatprep.subr.mxu0 0.0
    %99 = vmatpush1.msra.mxu0 %v38
    %100 = vmatprep.subr.mxu0 0.0
    %101 = vmatpush1.msra.mxu0 %v37
    %102 = vmatprep.subr.mxu0 0.0
    %103 = vmatpush1.msra.mxu0 %v36
    %104 = vmatprep.subr.mxu0 0.0
    %105 = vmatpush2.msra.mxu0 0.0
    %106 = vmatprep.subr.mxu0 0.0
    %107 = vmatpush2.msra.mxu0 0.0
    %108 = vmatprep.subr.mxu0 0.0
    %109 = vmatpush2.msra.mxu0 0.0
    %110 = vmatprep.subr.mxu0 0.0
    %111 = vmatpush2.msra.mxu0 0.0
    %112 = vmatprep.subr.mxu0 0.0
    %113 = vmatpush2.msra.mxu0 0.0
    %114 = vmatprep.subr.mxu0 0.0
    %115 = vmatpush2.msra.mxu0 0.0
    %116 = vmatprep.subr.mxu0 0.0
    %117 = vmatpush2.msra.mxu0 0.0
    %118 = vmatprep.subr.mxu0 0.0
    %119 = vmatpush2.msra.mxu0 0.0
    %120 = vmatprep.subr.mxu0 0.0
    %121 = vmatpush2.msra.mxu0 0.0
    %122 = vmatprep.subr.mxu0 0.0
    %123 = vmatpush2.msra.mxu0 0.0
    %124 = vmatprep.subr.mxu0 0.0
    %125 = vmatpush2.msra.mxu0 0.0
    %126 = vmatprep.subr.mxu0 0.0
    %127 = vmatpush2.msra.mxu0 0.0
    %128 = vmatprep.subr.mxu0 0.0
    %129 = vmatpush2.msra.mxu0 0.0
    %130 = vmatprep.subr.mxu0 0.0
    %131 = vmatpush2.msra.mxu0 0.0
    %132 = vmatprep.subr.mxu0 0.0
    %133 = vmatpush2.msra.mxu0 0.0
    %134 = vmatprep.subr.mxu0 0.0
    %135 = vmatpush2.msra.mxu0 0.0
    %136 = vmatprep.mubr.f32.mxu0 0.0
    %137 = vmatmul.mubr.f32.gmra.mxu0 %v49
    %v138 = vpop.f32.mrf.mxu0
    %v139 = vadd.f32 %v45, %v138
    %v140 = vpop.f32.mrf.mxu0
    %141 = vmatprep.mubr.f32.mxu0 0.0
    %142 = vmatmul.mubr.f32.gmra.mxu0 %v52
    %v143 = vpop.f32.mrf.mxu0
    %v144 = vadd.f32 %v45, %v143
    %v145 = vpop.f32.mrf.mxu0
    %146 = vmatprep.mubr.f32.mxu0 0.0
    %147 = vmatmul.mubr.f32.gmra.mxu0 %v55
    %v148 = vpop.f32.mrf.mxu0
    %v149 = vadd.f32 %v45, %v148
    %v150 = vpop.f32.mrf.mxu0
    %151 = vmatprep.mubr.f32.mxu0 0.0
    %152 = vmatmul.mubr.f32.gmra.mxu0 %v58
    %v153 = vpop.f32.mrf.mxu0
    %v154 = vadd.f32 %v45, %v153
    %v155 = vpop.f32.mrf.mxu0
    %156 = vmatprep.mubr.f32.mxu0 0.0
    %157 = vmatmul.mubr.f32.gmra.mxu0 %v61
    %v158 = vpop.f32.mrf.mxu0
    %v159 = vadd.f32 %v45, %v158
    %v160 = vpop.f32.mrf.mxu0
    %161 = vmatprep.mubr.f32.mxu0 0.0
    %162 = vmatmul.mubr.f32.gmra.mxu0 %v64
    %v163 = vpop.f32.mrf.mxu0
    %v164 = vadd.f32 %v45, %v163
    %v165 = vpop.f32.mrf.mxu0
    %166 = vmatprep.mubr.f32.mxu0 0.0
    %167 = vmatmul.mubr.f32.gmra.mxu0 %v67
    %v168 = vpop.f32.mrf.mxu0
    %v169 = vadd.f32 %v45, %v168
    %v170 = vpop.f32.mrf.mxu0
    %171 = vmatprep.mubr.f32.mxu0 0.0
    %172 = vmatmul.mubr.f32.gmra.mxu0 %v70
    %v173 = vpop.f32.mrf.mxu0
    %v174 = vadd.f32 %v45, %v173
    %v175 = vpop.f32.mrf.mxu0
    %176 = vdwg.mxu0
    %v177 = vtanh.pop %v139
    %v178 = vtanh.pop %v144
    %v179 = vtanh.pop %v149
    %v180 = vtanh.pop %v154
    %v181 = vtanh.pop %v159
    %v182 = vtanh.pop %v164
    %v183 = vtanh.pop %v169
    %v184 = vtanh.pop %v174
    %v185 = vld [vmem:[%s4] sm:$0x1]
    %v187 = vlaneseq
    %v188 = vshrl.u32 %v187, 7
    %v189 = vsub.s32 0, %v188
    %v190 = vrot.slane %v185, %v189
    %v192 = vmul.f32 %v177, %v190
    %v193 = vmul.f32 %v178, %v190
    %v194 = vmul.f32 %v179, %v190
    %v195 = vmul.f32 %v180, %v190
    %v196 = vmul.f32 %v181, %v190
    %v197 = vmul.f32 %v182, %v190
    %v198 = vmul.f32 %v183, %v190
    %v199 = vmul.f32 %v184, %v190
    %v200 = vsel %vm47, %v192, 0.0
    %201 = vadd.xlane.f32.xlu0 %v200
    %v202 = vpop.xlane.xlu0 %201
    %v203 = vsel %vm47, %v193, 0.0
    %204 = vadd.xlane.f32.xlu0 %v203
    %v205 = vpop.xlane.xlu0 %204
    %v206 = vsel %vm47, %v194, 0.0
    %207 = vadd.xlane.f32.xlu0 %v206
    %v208 = vpop.xlane.xlu0 %207
    %v209 = vsel %vm47, %v195, 0.0
    %210 = vadd.xlane.f32.xlu0 %v209
    %v211 = vpop.xlane.xlu0 %210
    %v212 = vsel %vm47, %v196, 0.0
    %213 = vadd.xlane.f32.xlu0 %v212
    %v214 = vpop.xlane.xlu0 %213
    %v215 = vsel %vm47, %v197, 0.0
    %216 = vadd.xlane.f32.xlu0 %v215
    %v217 = vpop.xlane.xlu0 %216
    %v218 = vsel %vm47, %v198, 0.0
    %219 = vadd.xlane.f32.xlu0 %v218
    %v220 = vpop.xlane.xlu0 %219
    %v221 = vsel %vm47, %v199, 0.0
    %222 = vadd.xlane.f32.xlu0 %v221
    %v223 = vpop.xlane.xlu0 %222
    %s224 = sld [smem:[#allocation2]]
    %v225 = vstv %s224
    %v226 = vadd.f32 %v202, %v225
    %v227 = vadd.f32 %v205, %v225
    %v228 = vadd.f32 %v208, %v225
    %v229 = vadd.f32 %v211, %v225
    %v230 = vadd.f32 %v214, %v225
    %v231 = vadd.f32 %v217, %v225
    %v232 = vadd.f32 %v220, %v225
    %v233 = vadd.f32 %v223, %v225
    %v234 = vmul.f32 %v226, 1.442695
    %v235 = vpow.pop %v234
    %v236 = vmul.f32 %v227, 1.442695
    %v237 = vpow.pop %v236
    %v238 = vmul.f32 %v228, 1.442695
    %v239 = vpow.pop %v238
    %v240 = vmul.f32 %v229, 1.442695
    %v241 = vpow.pop %v240
    %v242 = vmul.f32 %v230, 1.442695
    %v243 = vpow.pop %v242
    %v244 = vmul.f32 %v231, 1.442695
    %v245 = vpow.pop %v244
    %v246 = vmul.f32 %v232, 1.442695
    %v247 = vpow.pop %v246
    %v248 = vmul.f32 %v233, 1.442695
    %v249 = vpow.pop %v248
    %v250 = vld [vmem:[%s1] sm:$0xf]
    %v251 = vlaneseq
    %v252 = vshrl.u32 %v251, 7
    %v253 = vsub.s32 0, %v252
    %v254 = vrot.slane %v250, %v253
    %256 = vbcast.lane.b32.xlu0 %v254, 256
    %v257 = vpop.permute.xlu0 %256
    %s259 = sor.u32 256, 8
    %260 = vbcast.lane.b32.xlu0 %v254, %s259
    %v261 = vpop.permute.xlu0 %260
    %v262 = vlaneseq
    %v263 = vshrl.u32 %v262, 7
    %v264 = vsub.s32 1, %v263
    %v265 = vrot.slane %v250, %v264
    %267 = vbcast.lane.b32.xlu0 %v265, 256
    %v268 = vpop.permute.xlu0 %267
    %s270 = sor.u32 256, 8
    %271 = vbcast.lane.b32.xlu0 %v265, %s270
    %v272 = vpop.permute.xlu0 %271
    %v273 = vlaneseq
    %v274 = vshrl.u32 %v273, 7
    %v275 = vsub.s32 2, %v274
    %v276 = vrot.slane %v250, %v275
    %278 = vbcast.lane.b32.xlu0 %v276, 256
    %v279 = vpop.permute.xlu0 %278
    %s281 = sor.u32 256, 8
    %282 = vbcast.lane.b32.xlu0 %v276, %s281
    %v283 = vpop.permute.xlu0 %282
    %v284 = vlaneseq
    %v285 = vshrl.u32 %v284, 7
    %v286 = vsub.s32 3, %v285
    %v287 = vrot.slane %v250, %v286
    %289 = vbcast.lane.b32.xlu0 %v287, 256
    %v290 = vpop.permute.xlu0 %289
    %s292 = sor.u32 256, 8
    %293 = vbcast.lane.b32.xlu0 %v287, %s292
    %v294 = vpop.permute.xlu0 %293
    %v295 = vmul.f32 %v235, %v257
    %v296 = vmul.f32 %v237, %v261
    %v297 = vmul.f32 %v239, %v268
    %v298 = vmul.f32 %v241, %v272
    %v299 = vmul.f32 %v243, %v279
    %v300 = vmul.f32 %v245, %v283
    %v301 = vmul.f32 %v247, %v290
    %v302 = vmul.f32 %v249, %v294
    %v303 = vadd.f32 %v295, %v296
    %v304 = vrot.slane %v303, 4
    %v305 = vadd.f32 %v303, %v304
    %v306 = vrot.slane %v305, 2
    %v307 = vadd.f32 %v305, %v306
    %v308 = vrot.slane %v307, 1
    %v309 = vadd.f32 %v307, %v308
    %v310 = vadd.f32 %v297, %v298
    %v311 = vrot.slane %v310, 4
    %v312 = vadd.f32 %v310, %v311
    %v313 = vrot.slane %v312, 2
    %v314 = vadd.f32 %v312, %v313
    %v315 = vrot.slane %v314, 1
    %v316 = vadd.f32 %v314, %v315
    %v317 = vadd.f32 %v299, %v300
    %v318 = vrot.slane %v317, 4
    %v319 = vadd.f32 %v317, %v318
    %v320 = vrot.slane %v319, 2
    %v321 = vadd.f32 %v319, %v320
    %v322 = vrot.slane %v321, 1
    %v323 = vadd.f32 %v321, %v322
    %v324 = vadd.f32 %v301, %v302
    %v325 = vrot.slane %v324, 4
    %v326 = vadd.f32 %v324, %v325
    %v327 = vrot.slane %v326, 2
    %v328 = vadd.f32 %v326, %v327
    %v329 = vrot.slane %v328, 1
    %v330 = vadd.f32 %v328, %v329
    %v331 = vrcp.pop %v309
    %v332 = vmul.f32 %v295, %v331
    %v333 = vmul.f32 %v296, %v331
    %v334 = vrcp.pop %v316
    %v335 = vmul.f32 %v297, %v334
    %v336 = vmul.f32 %v298, %v334
    %v337 = vrcp.pop %v323
    %v338 = vmul.f32 %v299, %v337
    %v339 = vmul.f32 %v300, %v337
    %v340 = vrcp.pop %v330
    %v341 = vmul.f32 %v301, %v340
    %v342 = vmul.f32 %v302, %v340
    %v343 = vmul.f32 %v28, %v332
    %v344 = vmul.f32 %v29, %v333
    %v345 = vmul.f32 %v30, %v335
    %v346 = vmul.f32 %v31, %v336
    %v347 = vmul.f32 %v32, %v338
    %v348 = vmul.f32 %v33, %v339
    %v349 = vmul.f32 %v34, %v341
    %v350 = vmul.f32 %v35, %v342
    %351 = vst.msk [vmem:[#allocation3] sm:$0xff] %vm47, %v343
    %352 = vst.msk [vmem:[#allocation3 + $0x8] sm:$0xff] %vm47, %v344
    %353 = vst.msk [vmem:[#allocation3 + $0x10] sm:$0xff] %vm47, %v345
    %354 = vst.msk [vmem:[#allocation3 + $0x18] sm:$0xff] %vm47, %v346
    %355 = vst.msk [vmem:[#allocation3 + $0x20] sm:$0xff] %vm47, %v347
    %356 = vst.msk [vmem:[#allocation3 + $0x28] sm:$0xff] %vm47, %v348
    %357 = vst.msk [vmem:[#allocation3 + $0x30] sm:$0xff] %vm47, %v349
    %358 = vst.msk [vmem:[#allocation3 + $0x38] sm:$0xff] %vm47, %v350
    %v367 = vlaneseq
    %v368 = vand.u32 %v367, 127
    %v369 = vlaneseq
    %v370 = vshrl.u32 %v369, 7
    %v371 = vsub.s32 %v368, %v370
    %v372 = vrot.slane %v332, %v371
    %v373 = vadd.s32 %v368, 4294967288
    %v374 = vlaneseq
    %v375 = vshrl.u32 %v374, 7
    %v376 = vsub.s32 %v373, %v375
    %v377 = vrot.slane %v333, %v376
    %vm378 = vcmask 130112
    %v379 = vsel %vm378, %v377, %v372
    %v380 = vlaneseq
    %v381 = vshrl.u32 %v380, 7
    %v382 = vsub.s32 %v368, %v381
    %v383 = vrot.slane %v335, %v382
    %v384 = vlaneseq
    %v385 = vshrl.u32 %v384, 7
    %v386 = vsub.s32 %v373, %v385
    %v387 = vrot.slane %v336, %v386
    %v388 = vsel %vm378, %v387, %v383
    %v389 = vlaneseq
    %v390 = vshrl.u32 %v389, 7
    %v391 = vsub.s32 %v368, %v390
    %v392 = vrot.slane %v338, %v391
    %v393 = vlaneseq
    %v394 = vshrl.u32 %v393, 7
    %v395 = vsub.s32 %v373, %v394
    %v396 = vrot.slane %v339, %v395
    %v397 = vsel %vm378, %v396, %v392
    %v398 = vlaneseq
    %v399 = vshrl.u32 %v398, 7
    %v400 = vsub.s32 %v368, %v399
    %v401 = vrot.slane %v341, %v400
    %v402 = vlaneseq
    %v403 = vshrl.u32 %v402, 7
    %v404 = vsub.s32 %v373, %v403
    %v405 = vrot.slane %v342, %v404
    %v406 = vsel %vm378, %v405, %v401
    %vm407 = vcmask 1041409
    %v408 = vsel %vm407, %v388, %v379
    %vm409 = vcmask 1042434
    %v410 = vsel %vm409, %v397, %v408
    %vm411 = vcmask 1043459
    %v412 = vsel %vm411, %v406, %v410
    %vm414 = vcmask 125952
    %415 = vst.msk [vmem:[#allocation5] sm:$0xf] %vm414, %v412
    // Predicated region
    $region26: #{attention_forward.1} parent=1 // pred_check
      _
    $region27: #{attention_forward.1} parent=1 // pred_check_branch
      %417 = sbr.rel (0) target = $region29
    $region28: #{attention_forward.1} parent=1 // pred_region
      %s419 = ssub.s32 1024, 1024
      %420 = vsyncadd [#allocation4], %s419
      %s421 = sshll.u32 [#allocation3], 4
      %s422 = int_to_ptr.vmem [resolvable:$true] %s421
      %427 = dma.vmem_to_hbm [thread:$0]  %s422, 1024, %s6, [#allocation4], 128, 128, 8
    $region29: #{attention_forward.1} parent=1 // pred_fallthru
      _
    // Predicated region
    $region30: #{attention_forward.1} parent=1 // pred_check
      _
    $region31: #{attention_forward.1} parent=1 // pred_check_branch
      %429 = sbr.rel (0) target = $region33
    $region32: #{attention_forward.1} parent=1 // pred_region
      %s431 = ssub.s32 64, 64
      %432 = vsyncadd [#allocation6], %s431
      %s434 = sshll.u32 [#allocation5], 4
      %s435 = int_to_ptr.vmem [resolvable:$true] %s434
      %437 = dma.vmem_to_hbm [thread:$0]  %s435, 64, %s7, [#allocation6]
    $region33: #{attention_forward.1} parent=1 // pred_fallthru
      _
    // Predicated region
    $region34: #{attention_forward.1} parent=1 // pred_check
      _
    $region35: #{attention_forward.1} parent=1 // pred_check_branch
      %439 = sbr.rel (0) target = $region37
    $region36: #{attention_forward.1} parent=1 // pred_region
      %440 = dma.done [#allocation4], 1024
    $region37: #{attention_forward.1} parent=1 // pred_fallthru
      _
    // Predicated region
    $region38: #{attention_forward.1} parent=1 // pred_check
      _
    $region39: #{attention_forward.1} parent=1 // pred_check_branch
      %442 = sbr.rel (0) target = $region41
    $region40: #{attention_forward.1} parent=1 // pred_region
      %443 = dma.done [#allocation6], 64
    $region41: #{attention_forward.1} parent=1 // pred_fallthru
      _
    %444 = vsyncpa [#allocation4], 1
    %445 = vsyncpa [#allocation6], 1

</llo_original>
